<compile_context>
chip_gen: v6e
topology: v6e:2x2x1
jax: 0.10.0
libtpu: 0.0.40
codegen_flags: <defaults>
</compile_context>

<pallas_src>
import functools

import jax
import jax.numpy as jnp
from jax.experimental import pallas as pl
from jax.experimental.pallas import tpu as pltpu


def _global_attention_kernel(h_ref, ps_ref, wh_ref, out_ref, num_ref, den_ref,
                             *, t_total, t_block):
    # h_ref  : (Bb, Tt, H)  batch/T block of h (native dtype)
    # ps_ref : (Bb, 1)      hoisted s_i projection + bias (f32, per batch row)
    # wh_ref : (H, 1)       linear weight slice acting on h (f32)
    # out_ref: (Bb, H)      result block (written at the last T step)
    # num_ref: (Bb, H) f32  scratch accumulator  sum_t e_t * h_t
    # den_ref: (Bb, 1) f32  scratch accumulator  sum_t e_t
    j = pl.program_id(1)

    @pl.when(j == 0)
    def _init():
        num_ref[...] = jnp.zeros_like(num_ref)
        den_ref[...] = jnp.zeros_like(den_ref)

    h = h_ref[...]
    bb, tt, hh = h.shape
    hf = h.astype(jnp.float32)                               # (Bb, Tt, H)
    wh = wh_ref[...]                                         # (H, 1)
    ps = ps_ref[...]                                         # (Bb, 1)

    # Linear(cat([s_i, h])) == (s_i @ ws^T + b) + h @ wh^T.
    # h-part of the contraction on the MXU: (Bb*Tt, H) @ (H, 1).
    hw = jnp.dot(hf.reshape(bb * tt, hh), wh,
                 precision=jax.lax.Precision.HIGHEST,
                 preferred_element_type=jnp.float32)         # (Bb*Tt, 1)
    logits = jnp.tanh(hw.reshape(bb, tt, 1) + ps[:, None, :])  # (Bb, Tt, 1)

    # tanh bounds logits to (-1, 1): exp cannot overflow, so the accumulating
    # (online) softmax needs no running max and is exact.
    e = jnp.exp(logits)                                      # (Bb, Tt, 1)

    if t_total % t_block != 0:
        # Mask T-padding rows so they do not contribute to the softmax.
        t_idx = j * t_block + jax.lax.broadcasted_iota(jnp.int32, (bb, tt, 1), 1)
        e = jnp.where(t_idx < t_total, e, 0.0)

    den_ref[...] += jnp.sum(e, axis=1)                       # (Bb, 1)
    num_ref[...] += jnp.sum(e * hf, axis=1)                  # (Bb, H)

    @pl.when(j == pl.num_programs(1) - 1)
    def _finalize():
        # Exact divide: denom is only (Bb, 1), cost is invisible next to the
        # HBM-bound h stream.
        out_ref[...] = (num_ref[...] / den_ref[...]).astype(out_ref.dtype)


def _round_up(x, m):
    return ((x + m - 1) // m) * m


def _round_down(x, m):
    return max(m, (x // m) * m)


def _choose_blocks(B, T, H, itemsize, budget_bytes=32 << 20):
    """Pick (Bb, Tt) so the per-step working set stays well inside VMEM.

    Accounting per (Bb, Tt, H) tile:
      2 * itemsize bytes/elem    double-buffered input DMA stream
      + 8 bytes/elem             f32 working copy + f32 weighted-product temp
    A 32 MiB budget plus a 48 MiB vmem_limit leaves headroom on v7x (64 MiB/TC)
    while tiles stay multi-MiB (HBM-roofline friendly on v5e/v6e).
    """
    per_elem = 2 * itemsize + 8
    max_elems = max(budget_bytes // per_elem, 8 * 8 * max(H, 1))

    if 8 * T * H <= max_elems:
        # At least 8 batch rows fit with the full T extent: block over batch.
        Tt = T
        fit_rows = _round_down(max_elems // max(T * H, 1), 8)
        # Cap Bb near ceil(B/2) so the batch grid has >= 2 steps (pipeline
        # overlap + 2-TensorCore sharding on v7x).
        half_rows = _round_up(max(-(-B // 2), 1), 8)
        Bb = min(fit_rows, half_rows)
    else:
        # Even 8 rows over the full T blow the budget: tile the T axis too.
        Bb = 8
        Tt = min(T, _round_down(max_elems // (8 * max(H, 1)), 8))
    return Bb, Tt


@functools.partial(jax.jit, static_argnames=("batch_first",))
def global_attention(s_i, h, weight, bias, batch_first=True):
    """weight: (1, S+H), bias: (1,) — matches nn.Linear(s_hid + h_hid, 1)."""
    if not batch_first:
        h = jnp.transpose(h, (1, 0, 2))
    B, S = s_i.shape
    _, T, H = h.shape

    ws = weight[:, :S].astype(jnp.float32)                        # (1, S)
    wh = weight[:, S:].astype(jnp.float32).reshape(H, 1)          # (H, 1)

    # Hoisted: s_i contribution to the linear layer (+ bias), per batch row.
    proj_s = (jnp.dot(s_i.astype(jnp.float32), ws.T,
                      precision=jax.lax.Precision.HIGHEST)
              + bias.astype(jnp.float32).reshape(1, 1))           # (B, 1)

    out_dtype = jnp.result_type(h.dtype, weight.dtype)

    Bb, Tt = _choose_blocks(B, T, H, jnp.dtype(h.dtype).itemsize)
    nb = max(2, pl.cdiv(B, Bb))          # force >= 2 batch grid steps
    nt = pl.cdiv(T, Tt)
    B_pad = nb * Bb
    T_pad = nt * Tt
    if B_pad != B or T_pad != T:
        # Zero padding is benign: padded batch rows produce junk sliced off
        # below; padded T rows are masked out of the softmax in the kernel.
        h = jnp.pad(h, ((0, B_pad - B), (0, T_pad - T), (0, 0)))
        proj_s = jnp.pad(proj_s, ((0, B_pad - B), (0, 0)))

    kernel = functools.partial(_global_attention_kernel, t_total=T, t_block=Tt)

    out = pl.pallas_call(
        kernel,
        out_shape=jax.ShapeDtypeStruct((B_pad, H), out_dtype),
        grid=(nb, nt),
        in_specs=[
            pl.BlockSpec((Bb, Tt, H), lambda i, j: (i, j, 0)),
            pl.BlockSpec((Bb, 1), lambda i, j: (i, 0)),
            pl.BlockSpec((H, 1), lambda i, j: (0, 0)),
        ],
        out_specs=pl.BlockSpec((Bb, H), lambda i, j: (i, 0)),
        scratch_shapes=[
            pltpu.VMEM((Bb, H), jnp.float32),   # num accumulator
            pltpu.VMEM((Bb, 1), jnp.float32),   # denom accumulator
        ],
        compiler_params=pltpu.CompilerParams(
            dimension_semantics=("parallel", "arbitrary"),
            vmem_limit_bytes=48 * 1024 * 1024,
        ),
    )(h, proj_s, wh)
    return out[:B]


def _reference(s_i, h, weight, bias):
    # Pure-JAX replica of the torch forward for verification.
    T = h.shape[1]
    s_rep = jnp.repeat(s_i[:, None, :], T, axis=1)                   # (B, T, S)
    x = jnp.concatenate([s_rep, h], axis=2)                          # (B, T, S+H)
    x = jnp.tanh(jnp.einsum("btd,od->bto", x, weight,
                            precision=jax.lax.Precision.HIGHEST) + bias)
    a = jax.nn.softmax(x, axis=1)                                    # (B, T, 1)
    return jnp.einsum("bto,bth->bh", a, h,
                      precision=jax.lax.Precision.HIGHEST)           # (B, H)


if __name__ == "__main__":
    B, T, S, H = 2, 8, 32, 32   # batch, seq len, s_hid_dim, h_j_hid_dim

    key = jax.random.PRNGKey(0)
    k_s, k_h, k_w, k_b = jax.random.split(key, 4)
    s_i = jax.random.normal(k_s, (B, S), dtype=jnp.float32)
    h = jax.random.normal(k_h, (B, T, H), dtype=jnp.float32)

    # nn.Linear(S+H, 1): weight (1, S+H), bias (1,)
    bound = 1.0 / jnp.sqrt(jnp.float32(S + H))
    weight = jax.random.uniform(k_w, (1, S + H), jnp.float32, -bound, bound)
    bias = jax.random.uniform(k_b, (1,), jnp.float32, -bound, bound)

    out = global_attention(s_i, h, weight, bias, batch_first=True)
    out = jax.block_until_ready(out)

    ref = _reference(s_i, h, weight, bias)
    assert out.shape == (B, H)
    assert jnp.allclose(out, ref, atol=1e-4, rtol=1e-4), "mismatch vs reference"

    print("KERNEL_OK")
</pallas_src>

<mosaic_0001>
module attributes {stable_mosaic.version = 11 : i64} {
  func.func @_global_attention_kernel(%arg0: i32, %arg1: i32, %arg2: memref<8x8x32xf32, #tpu.memory_space<vmem>>, %arg3: memref<8x1xf32, #tpu.memory_space<vmem>>, %arg4: memref<32x1xf32, #tpu.memory_space<vmem>>, %arg5: memref<8x32xf32, #tpu.memory_space<vmem>>, %arg6: memref<8x32xf32, #tpu.memory_space<vmem>>, %arg7: memref<8x1xf32, #tpu.memory_space<vmem>>) attributes {dimension_semantics = [#tpu.dimension_semantics<parallel>, #tpu.dimension_semantics<arbitrary>], iteration_bounds = array<i64: 2, 1>, scalar_prefetch = 0 : i64, scratch_operands = 2 : i64, tpu.core_type = #tpu.core_type<tc>, window_params = [{transform_indices = @transform_0, window_bounds = array<i64: 8, 8, 32>}, {transform_indices = @transform_1, window_bounds = array<i64: 8, 1>}, {pipeline_mode = #tpu.pipeline_mode<synchronous>, transform_indices = @transform_2, window_bounds = array<i64: 32, 1>}, {transform_indices = @transform_3, window_bounds = array<i64: 8, 32>}]} {
    %c0_i32 = arith.constant 0 : i32
    %0 = arith.cmpi eq, %arg1, %c0_i32 : i32
    %1 = arith.extui %0 : i1 to i32
    %c0_i32_0 = arith.constant 0 : i32
    %2 = arith.cmpi ne, %1, %c0_i32_0 : i32
    scf.if %2 {
      %cst_19 = arith.constant 0.000000e+00 : f32
      %27 = vector.broadcast %cst_19 : f32 to vector<8x32xf32>
      %c0_20 = arith.constant 0 : index
      %c0_21 = arith.constant 0 : index
      %28 = vector.load %arg6[%c0_20, %c0_21] : memref<8x32xf32, #tpu.memory_space<vmem>>, vector<8x32xf32>
      tpu.vector_store %arg6[%c0_20, %c0_21], %27 {strides = array<i32>} : memref<8x32xf32, #tpu.memory_space<vmem>>, vector<8x32xf32>,
      %cst_22 = arith.constant 0.000000e+00 : f32
      %29 = vector.broadcast %cst_22 : f32 to vector<8x1xf32>
      %c0_23 = arith.constant 0 : index
      %c0_24 = arith.constant 0 : index
      %30 = vector.load %arg7[%c0_23, %c0_24] : memref<8x1xf32, #tpu.memory_space<vmem>>, vector<8x1xf32>
      tpu.vector_store %arg7[%c0_23, %c0_24], %29 {strides = array<i32>} : memref<8x1xf32, #tpu.memory_space<vmem>>, vector<8x1xf32>,
    } else {
    }
    %c0 = arith.constant 0 : index
    %c0_1 = arith.constant 0 : index
    %c0_2 = arith.constant 0 : index
    %3 = vector.load %arg2[%c0, %c0_1, %c0_2] : memref<8x8x32xf32, #tpu.memory_space<vmem>>, vector<8x8x32xf32>
    %c0_3 = arith.constant 0 : index
    %c0_4 = arith.constant 0 : index
    %4 = vector.load %arg4[%c0_3, %c0_4] : memref<32x1xf32, #tpu.memory_space<vmem>>, vector<32x1xf32>
    %c0_5 = arith.constant 0 : index
    %c0_6 = arith.constant 0 : index
    %5 = vector.load %arg3[%c0_5, %c0_6] : memref<8x1xf32, #tpu.memory_space<vmem>>, vector<8x1xf32>
    %6 = vector.shape_cast %3 : vector<8x8x32xf32> to vector<64x32xf32>
    %cst = arith.constant dense<0.000000e+00> : vector<64x1xf32>
    %7 = tpu.matmul %6, %4, %cst {dimension_numbers = #tpu.dot_dimension_numbers<[1], [0], [0], [1], [0, 0, 1, 1], [], []>, precision = #tpu.contract_precision<fp32>} : vector<64x32xf32>, vector<32x1xf32>, vector<64x1xf32> -> vector<64x1xf32>
    %8 = vector.shape_cast %7 : vector<64x1xf32> to vector<8x8x1xf32>
    %9 = vector.shape_cast %5 : vector<8x1xf32> to vector<8x1x1xf32>
    %10 = vector.broadcast %9 : vector<8x1x1xf32> to vector<8x8x1xf32>
    %11 = arith.addf %8, %10 : vector<8x8x1xf32>
    %12 = math.tanh %11 : vector<8x8x1xf32>
    %13 = math.exp %12 : vector<8x8x1xf32>
    %c0_7 = arith.constant 0 : index
    %c0_8 = arith.constant 0 : index
    %14 = vector.load %arg7[%c0_7, %c0_8] : memref<8x1xf32, #tpu.memory_space<vmem>>, vector<8x1xf32>
    %cst_9 = arith.constant dense<0.000000e+00> : vector<8x1xf32>
    %15 = vector.multi_reduction <add>, %13, %cst_9 [1] : vector<8x8x1xf32> to vector<8x1xf32>
    %16 = arith.addf %14, %15 : vector<8x1xf32>
    %c0_10 = arith.constant 0 : index
    %c0_11 = arith.constant 0 : index
    %17 = vector.load %arg7[%c0_10, %c0_11] : memref<8x1xf32, #tpu.memory_space<vmem>>, vector<8x1xf32>
    tpu.vector_store %arg7[%c0_10, %c0_11], %16 {strides = array<i32>} : memref<8x1xf32, #tpu.memory_space<vmem>>, vector<8x1xf32>,
    %c0_12 = arith.constant 0 : index
    %c0_13 = arith.constant 0 : index
    %18 = vector.load %arg6[%c0_12, %c0_13] : memref<8x32xf32, #tpu.memory_space<vmem>>, vector<8x32xf32>
    %19 = vector.broadcast %13 : vector<8x8x1xf32> to vector<8x8x32xf32>
    %20 = arith.mulf %19, %3 : vector<8x8x32xf32>
    %cst_14 = arith.constant dense<0.000000e+00> : vector<8x32xf32>
    %21 = vector.multi_reduction <add>, %20, %cst_14 [1] : vector<8x8x32xf32> to vector<8x32xf32>
    %22 = arith.addf %18, %21 : vector<8x32xf32>
    %c0_15 = arith.constant 0 : index
    %c0_16 = arith.constant 0 : index
    %23 = vector.load %arg6[%c0_15, %c0_16] : memref<8x32xf32, #tpu.memory_space<vmem>>, vector<8x32xf32>
    tpu.vector_store %arg6[%c0_15, %c0_16], %22 {strides = array<i32>} : memref<8x32xf32, #tpu.memory_space<vmem>>, vector<8x32xf32>,
    %c0_i32_17 = arith.constant 0 : i32
    %24 = arith.cmpi eq, %arg1, %c0_i32_17 : i32
    %25 = arith.extui %24 : i1 to i32
    %c0_i32_18 = arith.constant 0 : i32
    %26 = arith.cmpi ne, %25, %c0_i32_18 : i32
    scf.if %26 {
      %c0_19 = arith.constant 0 : index
      %c0_20 = arith.constant 0 : index
      %27 = vector.load %arg6[%c0_19, %c0_20] : memref<8x32xf32, #tpu.memory_space<vmem>>, vector<8x32xf32>
      %c0_21 = arith.constant 0 : index
      %c0_22 = arith.constant 0 : index
      %28 = vector.load %arg7[%c0_21, %c0_22] : memref<8x1xf32, #tpu.memory_space<vmem>>, vector<8x1xf32>
      %29 = vector.broadcast %28 : vector<8x1xf32> to vector<8x32xf32>
      %30 = arith.divf %27, %29 : vector<8x32xf32>
      %c0_23 = arith.constant 0 : index
      %c0_24 = arith.constant 0 : index
      %31 = vector.load %arg5[%c0_23, %c0_24] : memref<8x32xf32, #tpu.memory_space<vmem>>, vector<8x32xf32>
      tpu.vector_store %arg5[%c0_23, %c0_24], %30 {strides = array<i32>} : memref<8x32xf32, #tpu.memory_space<vmem>>, vector<8x32xf32>,
    } else {
    }
    return
  }
  func.func @transform_0(%arg0: i32, %arg1: i32) -> (i32, i32, i32) {
    %c0_i32 = arith.constant 0 : i32
    %c0_i32_0 = arith.constant 0 : i32
    return %arg0, %arg1, %c0_i32 : i32, i32, i32
  }
  func.func @transform_1(%arg0: i32, %arg1: i32) -> (i32, i32) {
    %c0_i32 = arith.constant 0 : i32
    %c0_i32_0 = arith.constant 0 : i32
    return %arg0, %c0_i32 : i32, i32
  }
  func.func @transform_2(%arg0: i32, %arg1: i32) -> (i32, i32) {
    %c0_i32 = arith.constant 0 : i32
    %c0_i32_0 = arith.constant 0 : i32
    %c0_i32_1 = arith.constant 0 : i32
    return %c0_i32, %c0_i32_0 : i32, i32
  }
  func.func @transform_3(%arg0: i32, %arg1: i32) -> (i32, i32) {
    %c0_i32 = arith.constant 0 : i32
    %c0_i32_0 = arith.constant 0 : i32
    return %arg0, %c0_i32 : i32, i32
  }
}

</mosaic_0001>

<llo_original>
// kernel: global_attention.1
$region0: #{global_attention.1}
  #allocation0 [shape = 'u32[]', space=smem, size = 0x4, offset = 0x4, fixed_abs, tag = 'smem constant byte address 0x4 - core index']
  #allocation1 [shape = 'u32[144,128]{1,0:T(1,128)}', space=vmem, size = 0x12000, scoped, tag = 'internal scratch']
  #allocation2 [shape = 'f32[8,32]{1,0:T(8,128)}', space=vmem, size = 0x1000, scoped, tag = 'scratch operand']
  #allocation3 [shape = 'f32[8,1]{1,0:T(8,128)}', space=vmem, size = 0x1000, scoped, tag = 'scratch operand']
  %s0 = inlined_call_operand.vmem [shape: f32[16,8,32], index: 0, kind: input, shape index: {}]
  %s1 = inlined_call_operand.vmem [shape: f32[16,1], index: 1, kind: input, shape index: {}]
  %s2 = inlined_call_operand.vmem [shape: f32[32,1], index: 2, kind: input, shape index: {}]
  %s3 = inlined_call_operand.vmem [shape: f32[16,32], index: 3, kind: output, shape index: {}]
  %s4 = sld [smem:[#allocation0]]
  $region53: #{global_attention.1} parent=0
    _
  %s6 = ssub.s32 1, %s4
  %s7 = scalar_select 0, %s6, %s4
  loop: start=0, step=1, limit=4
  $region2: #{global_attention.1} parent=0 // loop_pre_header
    _
  $region3: #{global_attention.1} parent=0 // loop_header
    %s9 = sphi 0, %s13
    %p10 = scmp.ge.s32.totalorder %s9, 4
    %s16 = sphi 0, %s28
    %s17 = sphi 0, %s24
    %s18 = sphi 0, %s16
    %s19 = sphi 0, %s17
    %s20 = sphi 0, %s18
    %s21 = sphi 0, %s19
    %s33 = sphi 0, %s35
    %s36 = sphi 0, %s33
    %s37 = sphi 0, %s36
    %s53 = sphi 0, %s37
    %s59 = sphi 0, %s61
    %s62 = sphi 0, %s59
    %s63 = sphi 0, %s62
    %s79 = sphi 0, %s63
    %s83 = sphi 0, %s83
    %s85 = sphi 0, %s83
    %s86 = sphi 0, %s85
    %s100 = sphi 0, %s86
    %s106 = sphi 0, %s108
    %s109 = sphi 0, %s106
    %s110 = sphi 0, %s109
    %s126 = sphi 0, %s110
  $region4: #{global_attention.1} parent=0 // loop_header_branch
    %12 = sbr.rel (%p10) target = $region8
  $region5: #{global_attention.1} parent=0 // loop_body
    %s14 = ssub.s32 %s9, 1
    %s15 = ssub.s32 %s9, 2
    %s22 = sadd.s32 1, %s17
    %p23 = scmp.ge.s32.totalorder %s22, 1
    %s24 = scalar_select %p23, 0, %s22
    %s25 = sadd.s32 1, %s16
    %s26 = scalar_select %p23, %s25, %s16
    %p27 = scmp.ge.s32.totalorder %s26, 2
    %s28 = scalar_select %p27, 0, %s26
    %s29 = ssub.s32 %s16, %s28
    %s30 = ssub.s32 %s17, %s24
    %s31 = sor.u32 %s29, %s30
    %p32 = scmp.eq.s32.totalorder %s31, 0
    %s34 = sadd.s32 %s33, 1
    %s35 = scalar_select %p32, %s33, %s34
    %p38 = pneg %p32
    %p39 = scmp.eq.s32.totalorder %s9, 1
    %p40 = por %p38, %p39
    %p41 = scmp.ne.s32.totalorder %s33, %s36
    %p42 = scmp.eq.s32.totalorder %s9, 0
    %p43 = por %p41, %p42
    %p44 = scmp.ne.s32.totalorder %s33, %s36
    %p45 = scmp.eq.s32.totalorder %s14, 1
    %p46 = por %p44, %p45
    %p47 = scmp.ne.s32.totalorder %s36, %s37
    %p48 = scmp.eq.s32.totalorder %s14, 0
    %p49 = por %p47, %p48
    %p50 = scmp.ne.s32.totalorder %s36, %s37
    %p51 = scmp.eq.s32.totalorder %s15, 1
    %p52 = por %p50, %p51
    %p54 = scmp.ne.s32.totalorder %s37, %s53
    %p55 = scmp.eq.s32.totalorder %s15, 0
    %p56 = por %p54, %p55
    %s57 = ssub.s32 %s16, %s28
    %p58 = scmp.eq.s32.totalorder %s57, 0
    %s60 = sadd.s32 %s59, 1
    %s61 = scalar_select %p58, %s59, %s60
    %p64 = pneg %p58
    %p65 = scmp.eq.s32.totalorder %s9, 1
    %p66 = por %p64, %p65
    %p67 = scmp.ne.s32.totalorder %s59, %s62
    %p68 = scmp.eq.s32.totalorder %s9, 0
    %p69 = por %p67, %p68
    %p70 = scmp.ne.s32.totalorder %s59, %s62
    %p71 = scmp.eq.s32.totalorder %s14, 1
    %p72 = por %p70, %p71
    %p73 = scmp.ne.s32.totalorder %s62, %s63
    %p74 = scmp.eq.s32.totalorder %s14, 0
    %p75 = por %p73, %p74
    %p76 = scmp.ne.s32.totalorder %s62, %s63
    %p77 = scmp.eq.s32.totalorder %s15, 1
    %p78 = por %p76, %p77
    %p80 = scmp.ne.s32.totalorder %s63, %s79
    %p81 = scmp.eq.s32.totalorder %s15, 0
    %p82 = por %p80, %p81
    %s84 = sadd.s32 %s83, 1
    %p87 = scmp.eq.s32.totalorder %s9, 1
    %p88 = scmp.ne.s32.totalorder %s83, %s85
    %p89 = scmp.eq.s32.totalorder %s9, 0
    %p90 = por %p88, %p89
    %p91 = scmp.ne.s32.totalorder %s83, %s85
    %p92 = scmp.eq.s32.totalorder %s14, 1
    %p93 = por %p91, %p92
    %p94 = scmp.ne.s32.totalorder %s85, %s86
    %p95 = scmp.eq.s32.totalorder %s14, 0
    %p96 = por %p94, %p95
    %p97 = scmp.ne.s32.totalorder %s85, %s86
    %p98 = scmp.eq.s32.totalorder %s15, 1
    %p99 = por %p97, %p98
    %p101 = scmp.ne.s32.totalorder %s86, %s100
    %p102 = scmp.eq.s32.totalorder %s15, 0
    %p103 = por %p101, %p102
    %s104 = ssub.s32 %s16, %s28
    %p105 = scmp.eq.s32.totalorder %s104, 0
    %s107 = sadd.s32 %s106, 1
    %s108 = scalar_select %p105, %s106, %s107
    %p111 = pneg %p105
    %p112 = scmp.eq.s32.totalorder %s9, 1
    %p113 = por %p111, %p112
    %p114 = scmp.ne.s32.totalorder %s106, %s109
    %p115 = scmp.eq.s32.totalorder %s9, 0
    %p116 = por %p114, %p115
    %p117 = scmp.ne.s32.totalorder %s106, %s109
    %p118 = scmp.eq.s32.totalorder %s14, 1
    %p119 = por %p117, %p118
    %p120 = scmp.ne.s32.totalorder %s109, %s110
    %p121 = scmp.eq.s32.totalorder %s14, 0
    %p122 = por %p120, %p121
    %p123 = scmp.ne.s32.totalorder %s109, %s110
    %p124 = scmp.eq.s32.totalorder %s15, 1
    %p125 = por %p123, %p124
    %p127 = scmp.ne.s32.totalorder %s110, %s126
    %p128 = scmp.eq.s32.totalorder %s15, 0
    %p129 = por %p127, %p128
    %p130 = scmp.le.s32.totalorder 1, %s9
    %p131 = scmp.lt.s32.totalorder %s9, 3
    %p132 = pnand %p130, %p131
    %p133 = pneg %p132
    // Predicated region
    $region9: #{global_attention.1} parent=5 // pred_check
      _
    $region10: #{global_attention.1} parent=5 // pred_check_branch
      %135 = sbr.rel (%p132) target = $region12
    $region11: #{global_attention.1} parent=5 // pred_region
      %s136 = ssub.s32 %s9, 1
      // Predicated region
      $region13: #{global_attention.1} parent=11 // pred_check
        %p137 = pneg %p96
      $region14: #{global_attention.1} parent=11 // pred_check_branch
        %139 = sbr.rel (%p137) target = $region16
      $region15: #{global_attention.1} parent=11 // pred_region
        _
      $region16: #{global_attention.1} parent=11 // pred_fallthru
        _
    $region12: #{global_attention.1} parent=5 // pred_fallthru
      _
    %p140 = scmp.lt.s32.totalorder %s9, 2
    // Predicated region
    $region17: #{global_attention.1} parent=5 // pred_check
      %p141 = pneg %p140
    $region18: #{global_attention.1} parent=5 // pred_check_branch
      %143 = sbr.rel (%p141) target = $region20
    $region19: #{global_attention.1} parent=5 // pred_region
      // Predicated region
      $region21: #{global_attention.1} parent=19 // pred_check
        %p144 = pneg %p43
      $region22: #{global_attention.1} parent=19 // pred_check_branch
        %146 = sbr.rel (%p144) target = $region24
      $region23: #{global_attention.1} parent=19 // pred_region
        %s147 = smul.u32 8, %s16
        %p148 = scmp.lt.s32.totalorder %s147, 15
        %s149 = scalar_select %p148, %s147, 15
        %p150 = scmp.lt.s32.totalorder %s17, 0
        %s151 = scalar_select %p150, %s17, 0
        %s152 = sadd.s32 %s151, %s149
        %s153 = smul.addr %s152, 8
        %s154 = scalar_lea.vmem %s0, %s153
        %s155 = smul.u32 8, %s16
      $region24: #{global_attention.1} parent=19 // pred_fallthru
        _
      // Predicated region
      $region25: #{global_attention.1} parent=19 // pred_check
        %p156 = pneg %p69
      $region26: #{global_attention.1} parent=19 // pred_check_branch
        %158 = sbr.rel (%p156) target = $region28
      $region27: #{global_attention.1} parent=19 // pred_region
        %p159 = scmp.lt.s32.totalorder %s16, 1
        %s160 = scalar_select %p159, %s16, 1
        %s161 = smul.addr %s160, 8
        %s162 = scalar_lea.vmem %s1, %s161
      $region28: #{global_attention.1} parent=19 // pred_fallthru
        _
    $region20: #{global_attention.1} parent=5 // pred_fallthru
      _
    %p163 = scmp.le.s32.totalorder 1, %s9
    %p164 = scmp.lt.s32.totalorder %s9, 3
    %p165 = pnand %p163, %p164
    %p166 = pneg %p165
    // Predicated region
    $region29: #{global_attention.1} parent=5 // pred_check
      _
    $region30: #{global_attention.1} parent=5 // pred_check_branch
      %168 = sbr.rel (%p165) target = $region32
    $region31: #{global_attention.1} parent=5 // pred_region
      %s169 = ssub.s32 %s9, 1
      %s170 = smul.u32 8, %s18
      %p171 = scmp.lt.s32.totalorder %s170, 15
      %s172 = scalar_select %p171, %s170, 15
      %p173 = scmp.lt.s32.totalorder %s19, 0
      %s174 = scalar_select %p173, %s19, 0
      %s175 = sadd.s32 %s174, %s172
      %s176 = smul.addr %s175, 8
      %s177 = scalar_lea.vmem %s0, %s176
      %p178 = pneg %p49
      %p179 = pneg %p46
      %p180 = scmp.lt.s32.totalorder %s18, 1
      %s181 = scalar_select %p180, %s18, 1
      %s182 = smul.addr %s181, 8
      %s183 = scalar_lea.vmem %s1, %s182
      %p184 = pneg %p75
      %p185 = pneg %p72
      %p186 = pneg %p96
      %p187 = pneg %p93
      %p188 = pneg %p122
      %p189 = pneg %p119
      %p190 = scmp.lt.s32.totalorder %s18, 1
      %s191 = scalar_select %p190, %s18, 1
      %s192 = smul.addr %s191, 8
      %s193 = scalar_lea.vmem %s3, %s192
      %s194 = smul.u32 8, %s18
      %p195 = scmp.lt.s32.totalorder %s194, 15
      %s196 = scalar_select %p195, %s194, 15
      %p197 = scmp.lt.s32.totalorder %s19, 0
      %s198 = scalar_select %p197, %s19, 0
      %s199 = sadd.s32 %s198, %s196
      %s200 = smul.addr %s199, 8
      %s201 = scalar_lea.vmem %s0, %s200
      %s202 = smul.u32 8, %s18
      %p203 = scmp.lt.s32.totalorder %s18, 1
      %s204 = scalar_select %p203, %s18, 1
      %s205 = smul.addr %s204, 8
      %s206 = scalar_lea.vmem %s1, %s205
      %p207 = scmp.lt.s32.totalorder %s18, 1
      %s208 = scalar_select %p207, %s18, 1
      %s209 = smul.addr %s208, 8
      %s210 = scalar_lea.vmem %s3, %s209
      %p211 = scmp.eq.s32.totalorder %s19, 0
      // Predicated region
      $region33: #{global_attention.1} parent=31 // pred_check
        %p212 = pneg %p211
      $region34: #{global_attention.1} parent=31 // pred_check_branch
        %214 = sbr.rel (%p212) target = $region36
      $region35: #{global_attention.1} parent=31 // pred_region
        %vm215 = vcmask 261120
        %216 = vst.msk [vmem:[#allocation2] sm:$0xff] %vm215, 0.0
        %vm217 = vcmask 7168
        %218 = vst.msk [vmem:[#allocation3] sm:$0xff] %vm217, 0.0
      $region36: #{global_attention.1} parent=31 // pred_fallthru
        _
      %v219 = vld [vmem:[%s201] sm:$0xff]
      %v220 = vld [vmem:[%s201 + $0x8] sm:$0xff]
      %v221 = vld [vmem:[%s201 + $0x10] sm:$0xff]
      %v222 = vld [vmem:[%s201 + $0x18] sm:$0xff]
      %v223 = vld [vmem:[%s201 + $0x20] sm:$0xff]
      %v224 = vld [vmem:[%s201 + $0x28] sm:$0xff]
      %v225 = vld [vmem:[%s201 + $0x30] sm:$0xff]
      %v226 = vld [vmem:[%s201 + $0x38] sm:$0xff]
      %v227 = vld [vmem:[%s2] sm:$0xff]
      %v228 = vld [vmem:[%s2 + $0x8] sm:$0xff]
      %v229 = vld [vmem:[%s2 + $0x10] sm:$0xff]
      %v230 = vld [vmem:[%s2 + $0x18] sm:$0xff]
      %v231 = vld [vmem:[%s206] sm:$0xff]
      %vm232 = vcmask 261120
      %v234 = vsel %vm232, %v219, 0
      %v237 = vsel %vm232, %v220, 0
      %v240 = vsel %vm232, %v221, 0
      %v243 = vsel %vm232, %v222, 0
      %v246 = vsel %vm232, %v223, 0
      %v249 = vsel %vm232, %v224, 0
      %v252 = vsel %vm232, %v225, 0
      %v255 = vsel %vm232, %v226, 0
      %257 = vmatprep.subr.mxu0 0.0
      %258 = vmatpush1.msra.mxu0 0.0
      %259 = vmatprep.subr.mxu0 0.0
      %260 = vmatpush1.msra.mxu0 0.0
      %261 = vmatprep.subr.mxu0 0.0
      %262 = vmatpush1.msra.mxu0 0.0
      %263 = vmatprep.subr.mxu0 0.0
      %264 = vmatpush1.msra.mxu0 0.0
      %265 = vmatprep.subr.mxu0 0.0
      %266 = vmatpush1.msra.mxu0 0.0
      %267 = vmatprep.subr.mxu0 0.0
      %268 = vmatpush1.msra.mxu0 0.0
      %269 = vmatprep.subr.mxu0 0.0
      %270 = vmatpush1.msra.mxu0 0.0
      %271 = vmatprep.subr.mxu0 0.0
      %272 = vmatpush1.msra.mxu0 0.0
      %273 = vmatprep.subr.mxu0 0.0
      %274 = vmatpush1.msra.mxu0 0.0
      %275 = vmatprep.subr.mxu0 0.0
      %276 = vmatpush1.msra.mxu0 0.0
      %277 = vmatprep.subr.mxu0 0.0
      %278 = vmatpush1.msra.mxu0 0.0
      %279 = vmatprep.subr.mxu0 0.0
      %280 = vmatpush1.msra.mxu0 0.0
      %281 = vmatprep.subr.mxu0 0.0
      %v282 = vand.u32 %v230, 4294901760
      %283 = vmatpush1.msra.mxu0 %v282
      %284 = vmatprep.subr.mxu0 0.0
      %v285 = vand.u32 %v229, 4294901760
      %286 = vmatpush1.msra.mxu0 %v285
      %287 = vmatprep.subr.mxu0 0.0
      %v288 = vand.u32 %v228, 4294901760
      %289 = vmatpush1.msra.mxu0 %v288
      %290 = vmatprep.subr.mxu0 0.0
      %v291 = vand.u32 %v227, 4294901760
      %292 = vmatpush1.msra.mxu0 %v291
      %293 = vmatprep.subr.mxu0 0.0
      %294 = vmatpush2.msra.mxu0 0.0
      %295 = vmatprep.subr.mxu0 0.0
      %296 = vmatpush2.msra.mxu0 0.0
      %297 = vmatprep.subr.mxu0 0.0
      %298 = vmatpush2.msra.mxu0 0.0
      %299 = vmatprep.subr.mxu0 0.0
      %300 = vmatpush2.msra.mxu0 0.0
      %301 = vmatprep.subr.mxu0 0.0
      %302 = vmatpush2.msra.mxu0 0.0
      %303 = vmatprep.subr.mxu0 0.0
      %304 = vmatpush2.msra.mxu0 0.0
      %305 = vmatprep.subr.mxu0 0.0
      %306 = vmatpush2.msra.mxu0 0.0
      %307 = vmatprep.subr.mxu0 0.0
      %308 = vmatpush2.msra.mxu0 0.0
      %309 = vmatprep.subr.mxu0 0.0
      %310 = vmatpush2.msra.mxu0 0.0
      %311 = vmatprep.subr.mxu0 0.0
      %312 = vmatpush2.msra.mxu0 0.0
      %313 = vmatprep.subr.mxu0 0.0
      %314 = vmatpush2.msra.mxu0 0.0
      %315 = vmatprep.subr.mxu0 0.0
      %316 = vmatpush2.msra.mxu0 0.0
      %317 = vmatprep.subr.mxu0 0.0
      %318 = vmatpush2.msra.mxu0 0.0
      %319 = vmatprep.subr.mxu0 0.0
      %320 = vmatpush2.msra.mxu0 0.0
      %321 = vmatprep.subr.mxu0 0.0
      %322 = vmatpush2.msra.mxu0 0.0
      %323 = vmatprep.subr.mxu0 0.0
      %324 = vmatpush2.msra.mxu0 0.0
      %325 = vmatprep.mubr.f32.mxu0 0.0
      %v326 = vand.u32 %v234, 4294901760
      %v327 = vsub.f32 %v234, %v326
      %v328 = vand.u32 %v327, 4294901760
      %v329 = vsub.f32 %v327, %v328
      %v330 = vand.u32 %v329, 4294901760
      %331 = vmatmul.mubr.f32.gmra.mxu0 %v330
      %v332 = vpop.f32.mrf.mxu0
      %v333 = vadd.f32 0.0, %v332
      %v334 = vpop.f32.mrf.mxu0
      %335 = vmatprep.mubr.f32.mxu0 0.0
      %v336 = vand.u32 %v237, 4294901760
      %v337 = vsub.f32 %v237, %v336
      %v338 = vand.u32 %v337, 4294901760
      %v339 = vsub.f32 %v337, %v338
      %v340 = vand.u32 %v339, 4294901760
      %341 = vmatmul.mubr.f32.gmra.mxu0 %v340
      %v342 = vpop.f32.mrf.mxu0
      %v343 = vadd.f32 0.0, %v342
      %v344 = vpop.f32.mrf.mxu0
      %345 = vmatprep.mubr.f32.mxu0 0.0
      %v346 = vand.u32 %v240, 4294901760
      %v347 = vsub.f32 %v240, %v346
      %v348 = vand.u32 %v347, 4294901760
      %v349 = vsub.f32 %v347, %v348
      %v350 = vand.u32 %v349, 4294901760
      %351 = vmatmul.mubr.f32.gmra.mxu0 %v350
      %v352 = vpop.f32.mrf.mxu0
      %v353 = vadd.f32 0.0, %v352
      %v354 = vpop.f32.mrf.mxu0
      %355 = vmatprep.mubr.f32.mxu0 0.0
      %v356 = vand.u32 %v243, 4294901760
      %v357 = vsub.f32 %v243, %v356
      %v358 = vand.u32 %v357, 4294901760
      %v359 = vsub.f32 %v357, %v358
      %v360 = vand.u32 %v359, 4294901760
      %361 = vmatmul.mubr.f32.gmra.mxu0 %v360
      %v362 = vpop.f32.mrf.mxu0
      %v363 = vadd.f32 0.0, %v362
      %v364 = vpop.f32.mrf.mxu0
      %365 = vmatprep.mubr.f32.mxu0 0.0
      %v366 = vand.u32 %v246, 4294901760
      %v367 = vsub.f32 %v246, %v366
      %v368 = vand.u32 %v367, 4294901760
      %v369 = vsub.f32 %v367, %v368
      %v370 = vand.u32 %v369, 4294901760
      %371 = vmatmul.mubr.f32.gmra.mxu0 %v370
      %v372 = vpop.f32.mrf.mxu0
      %v373 = vadd.f32 0.0, %v372
      %v374 = vpop.f32.mrf.mxu0
      %375 = vmatprep.mubr.f32.mxu0 0.0
      %v376 = vand.u32 %v249, 4294901760
      %v377 = vsub.f32 %v249, %v376
      %v378 = vand.u32 %v377, 4294901760
      %v379 = vsub.f32 %v377, %v378
      %v380 = vand.u32 %v379, 4294901760
      %381 = vmatmul.mubr.f32.gmra.mxu0 %v380
      %v382 = vpop.f32.mrf.mxu0
      %v383 = vadd.f32 0.0, %v382
      %v384 = vpop.f32.mrf.mxu0
      %385 = vmatprep.mubr.f32.mxu0 0.0
      %v386 = vand.u32 %v252, 4294901760
      %v387 = vsub.f32 %v252, %v386
      %v388 = vand.u32 %v387, 4294901760
      %v389 = vsub.f32 %v387, %v388
      %v390 = vand.u32 %v389, 4294901760
      %391 = vmatmul.mubr.f32.gmra.mxu0 %v390
      %v392 = vpop.f32.mrf.mxu0
      %v393 = vadd.f32 0.0, %v392
      %v394 = vpop.f32.mrf.mxu0
      %395 = vmatprep.mubr.f32.mxu0 0.0
      %v396 = vand.u32 %v255, 4294901760
      %v397 = vsub.f32 %v255, %v396
      %v398 = vand.u32 %v397, 4294901760
      %v399 = vsub.f32 %v397, %v398
      %v400 = vand.u32 %v399, 4294901760
      %401 = vmatmul.mubr.f32.gmra.mxu0 %v400
      %v402 = vpop.f32.mrf.mxu0
      %v403 = vadd.f32 0.0, %v402
      %v404 = vpop.f32.mrf.mxu0
      %405 = vdwg.mxu0
      %406 = vmatprep.subr.mxu0 0.0
      %407 = vmatpush1.msra.mxu0 0.0
      %408 = vmatprep.subr.mxu0 0.0
      %409 = vmatpush1.msra.mxu0 0.0
      %410 = vmatprep.subr.mxu0 0.0
      %411 = vmatpush1.msra.mxu0 0.0
      %412 = vmatprep.subr.mxu0 0.0
      %413 = vmatpush1.msra.mxu0 0.0
      %414 = vmatprep.subr.mxu0 0.0
      %415 = vmatpush1.msra.mxu0 0.0
      %416 = vmatprep.subr.mxu0 0.0
      %417 = vmatpush1.msra.mxu0 0.0
      %418 = vmatprep.subr.mxu0 0.0
      %419 = vmatpush1.msra.mxu0 0.0
      %420 = vmatprep.subr.mxu0 0.0
      %421 = vmatpush1.msra.mxu0 0.0
      %422 = vmatprep.subr.mxu0 0.0
      %423 = vmatpush1.msra.mxu0 0.0
      %424 = vmatprep.subr.mxu0 0.0
      %425 = vmatpush1.msra.mxu0 0.0
      %426 = vmatprep.subr.mxu0 0.0
      %427 = vmatpush1.msra.mxu0 0.0
      %428 = vmatprep.subr.mxu0 0.0
      %429 = vmatpush1.msra.mxu0 0.0
      %430 = vmatprep.subr.mxu0 0.0
      %v431 = vand.u32 %v230, 4294901760
      %v432 = vsub.f32 %v230, %v431
      %v433 = vand.u32 %v432, 4294901760
      %v434 = vsub.f32 %v432, %v433
      %v435 = vand.u32 %v434, 4294901760
      %436 = vmatpush1.msra.mxu0 %v435
      %437 = vmatprep.subr.mxu0 0.0
      %v438 = vand.u32 %v229, 4294901760
      %v439 = vsub.f32 %v229, %v438
      %v440 = vand.u32 %v439, 4294901760
      %v441 = vsub.f32 %v439, %v440
      %v442 = vand.u32 %v441, 4294901760
      %443 = vmatpush1.msra.mxu0 %v442
      %444 = vmatprep.subr.mxu0 0.0
      %v445 = vand.u32 %v228, 4294901760
      %v446 = vsub.f32 %v228, %v445
      %v447 = vand.u32 %v446, 4294901760
      %v448 = vsub.f32 %v446, %v447
      %v449 = vand.u32 %v448, 4294901760
      %450 = vmatpush1.msra.mxu0 %v449
      %451 = vmatprep.subr.mxu0 0.0
      %v452 = vand.u32 %v227, 4294901760
      %v453 = vsub.f32 %v227, %v452
      %v454 = vand.u32 %v453, 4294901760
      %v455 = vsub.f32 %v453, %v454
      %v456 = vand.u32 %v455, 4294901760
      %457 = vmatpush1.msra.mxu0 %v456
      %458 = vmatprep.subr.mxu0 0.0
      %459 = vmatpush2.msra.mxu0 0.0
      %460 = vmatprep.subr.mxu0 0.0
      %461 = vmatpush2.msra.mxu0 0.0
      %462 = vmatprep.subr.mxu0 0.0
      %463 = vmatpush2.msra.mxu0 0.0
      %464 = vmatprep.subr.mxu0 0.0
      %465 = vmatpush2.msra.mxu0 0.0
      %466 = vmatprep.subr.mxu0 0.0
      %467 = vmatpush2.msra.mxu0 0.0
      %468 = vmatprep.subr.mxu0 0.0
      %469 = vmatpush2.msra.mxu0 0.0
      %470 = vmatprep.subr.mxu0 0.0
      %471 = vmatpush2.msra.mxu0 0.0
      %472 = vmatprep.subr.mxu0 0.0
      %473 = vmatpush2.msra.mxu0 0.0
      %474 = vmatprep.subr.mxu0 0.0
      %475 = vmatpush2.msra.mxu0 0.0
      %476 = vmatprep.subr.mxu0 0.0
      %477 = vmatpush2.msra.mxu0 0.0
      %478 = vmatprep.subr.mxu0 0.0
      %479 = vmatpush2.msra.mxu0 0.0
      %480 = vmatprep.subr.mxu0 0.0
      %481 = vmatpush2.msra.mxu0 0.0
      %482 = vmatprep.subr.mxu0 0.0
      %483 = vmatpush2.msra.mxu0 0.0
      %484 = vmatprep.subr.mxu0 0.0
      %485 = vmatpush2.msra.mxu0 0.0
      %486 = vmatprep.subr.mxu0 0.0
      %487 = vmatpush2.msra.mxu0 0.0
      %488 = vmatprep.subr.mxu0 0.0
      %489 = vmatpush2.msra.mxu0 0.0
      %490 = vmatprep.mubr.f32.mxu0 0.0
      %v491 = vand.u32 %v234, 4294901760
      %492 = vmatmul.mubr.f32.gmra.mxu0 %v491
      %v493 = vpop.f32.mrf.mxu0
      %v494 = vadd.f32 %v333, %v493
      %v495 = vpop.f32.mrf.mxu0
      %496 = vmatprep.mubr.f32.mxu0 0.0
      %v497 = vand.u32 %v237, 4294901760
      %498 = vmatmul.mubr.f32.gmra.mxu0 %v497
      %v499 = vpop.f32.mrf.mxu0
      %v500 = vadd.f32 %v343, %v499
      %v501 = vpop.f32.mrf.mxu0
      %502 = vmatprep.mubr.f32.mxu0 0.0
      %v503 = vand.u32 %v240, 4294901760
      %504 = vmatmul.mubr.f32.gmra.mxu0 %v503
      %v505 = vpop.f32.mrf.mxu0
      %v506 = vadd.f32 %v353, %v505
      %v507 = vpop.f32.mrf.mxu0
      %508 = vmatprep.mubr.f32.mxu0 0.0
      %v509 = vand.u32 %v243, 4294901760
      %510 = vmatmul.mubr.f32.gmra.mxu0 %v509
      %v511 = vpop.f32.mrf.mxu0
      %v512 = vadd.f32 %v363, %v511
      %v513 = vpop.f32.mrf.mxu0
      %514 = vmatprep.mubr.f32.mxu0 0.0
      %v515 = vand.u32 %v246, 4294901760
      %516 = vmatmul.mubr.f32.gmra.mxu0 %v515
      %v517 = vpop.f32.mrf.mxu0
      %v518 = vadd.f32 %v373, %v517
      %v519 = vpop.f32.mrf.mxu0
      %520 = vmatprep.mubr.f32.mxu0 0.0
      %v521 = vand.u32 %v249, 4294901760
      %522 = vmatmul.mubr.f32.gmra.mxu0 %v521
      %v523 = vpop.f32.mrf.mxu0
      %v524 = vadd.f32 %v383, %v523
      %v525 = vpop.f32.mrf.mxu0
      %526 = vmatprep.mubr.f32.mxu0 0.0
      %v527 = vand.u32 %v252, 4294901760
      %528 = vmatmul.mubr.f32.gmra.mxu0 %v527
      %v529 = vpop.f32.mrf.mxu0
      %v530 = vadd.f32 %v393, %v529
      %v531 = vpop.f32.mrf.mxu0
      %532 = vmatprep.mubr.f32.mxu0 0.0
      %v533 = vand.u32 %v255, 4294901760
      %534 = vmatmul.mubr.f32.gmra.mxu0 %v533
      %v535 = vpop.f32.mrf.mxu0
      %v536 = vadd.f32 %v403, %v535
      %v537 = vpop.f32.mrf.mxu0
      %538 = vdwg.mxu0
      %539 = vmatprep.subr.mxu0 0.0
      %540 = vmatpush1.msra.mxu0 0.0
      %541 = vmatprep.subr.mxu0 0.0
      %542 = vmatpush1.msra.mxu0 0.0
      %543 = vmatprep.subr.mxu0 0.0
      %544 = vmatpush1.msra.mxu0 0.0
      %545 = vmatprep.subr.mxu0 0.0
      %546 = vmatpush1.msra.mxu0 0.0
      %547 = vmatprep.subr.mxu0 0.0
      %548 = vmatpush1.msra.mxu0 0.0
      %549 = vmatprep.subr.mxu0 0.0
      %550 = vmatpush1.msra.mxu0 0.0
      %551 = vmatprep.subr.mxu0 0.0
      %552 = vmatpush1.msra.mxu0 0.0
      %553 = vmatprep.subr.mxu0 0.0
      %554 = vmatpush1.msra.mxu0 0.0
      %555 = vmatprep.subr.mxu0 0.0
      %556 = vmatpush1.msra.mxu0 0.0
      %557 = vmatprep.subr.mxu0 0.0
      %558 = vmatpush1.msra.mxu0 0.0
      %559 = vmatprep.subr.mxu0 0.0
      %560 = vmatpush1.msra.mxu0 0.0
      %561 = vmatprep.subr.mxu0 0.0
      %562 = vmatpush1.msra.mxu0 0.0
      %563 = vmatprep.subr.mxu0 0.0
      %v564 = vand.u32 %v230, 4294901760
      %v565 = vsub.f32 %v230, %v564
      %566 = vmatpush1.msra.mxu0 %v565
      %567 = vmatprep.subr.mxu0 0.0
      %v568 = vand.u32 %v229, 4294901760
      %v569 = vsub.f32 %v229, %v568
      %570 = vmatpush1.msra.mxu0 %v569
      %571 = vmatprep.subr.mxu0 0.0
      %v572 = vand.u32 %v228, 4294901760
      %v573 = vsub.f32 %v228, %v572
      %574 = vmatpush1.msra.mxu0 %v573
      %575 = vmatprep.subr.mxu0 0.0
      %v576 = vand.u32 %v227, 4294901760
      %v577 = vsub.f32 %v227, %v576
      %578 = vmatpush1.msra.mxu0 %v577
      %579 = vmatprep.subr.mxu0 0.0
      %580 = vmatpush2.msra.mxu0 0.0
      %581 = vmatprep.subr.mxu0 0.0
      %582 = vmatpush2.msra.mxu0 0.0
      %583 = vmatprep.subr.mxu0 0.0
      %584 = vmatpush2.msra.mxu0 0.0
      %585 = vmatprep.subr.mxu0 0.0
      %586 = vmatpush2.msra.mxu0 0.0
      %587 = vmatprep.subr.mxu0 0.0
      %588 = vmatpush2.msra.mxu0 0.0
      %589 = vmatprep.subr.mxu0 0.0
      %590 = vmatpush2.msra.mxu0 0.0
      %591 = vmatprep.subr.mxu0 0.0
      %592 = vmatpush2.msra.mxu0 0.0
      %593 = vmatprep.subr.mxu0 0.0
      %594 = vmatpush2.msra.mxu0 0.0
      %595 = vmatprep.subr.mxu0 0.0
      %596 = vmatpush2.msra.mxu0 0.0
      %597 = vmatprep.subr.mxu0 0.0
      %598 = vmatpush2.msra.mxu0 0.0
      %599 = vmatprep.subr.mxu0 0.0
      %600 = vmatpush2.msra.mxu0 0.0
      %601 = vmatprep.subr.mxu0 0.0
      %602 = vmatpush2.msra.mxu0 0.0
      %603 = vmatprep.subr.mxu0 0.0
      %604 = vmatpush2.msra.mxu0 0.0
      %605 = vmatprep.subr.mxu0 0.0
      %606 = vmatpush2.msra.mxu0 0.0
      %607 = vmatprep.subr.mxu0 0.0
      %608 = vmatpush2.msra.mxu0 0.0
      %609 = vmatprep.subr.mxu0 0.0
      %610 = vmatpush2.msra.mxu0 0.0
      %611 = vmatprep.mubr.f32.mxu0 0.0
      %v612 = vand.u32 %v234, 4294901760
      %v613 = vsub.f32 %v234, %v612
      %614 = vmatmul.mubr.f32.gmra.mxu0 %v613
      %v615 = vpop.f32.mrf.mxu0
      %v616 = vadd.f32 %v494, %v615
      %v617 = vpop.f32.mrf.mxu0
      %618 = vmatprep.mubr.f32.mxu0 0.0
      %v619 = vand.u32 %v237, 4294901760
      %v620 = vsub.f32 %v237, %v619
      %621 = vmatmul.mubr.f32.gmra.mxu0 %v620
      %v622 = vpop.f32.mrf.mxu0
      %v623 = vadd.f32 %v500, %v622
      %v624 = vpop.f32.mrf.mxu0
      %625 = vmatprep.mubr.f32.mxu0 0.0
      %v626 = vand.u32 %v240, 4294901760
      %v627 = vsub.f32 %v240, %v626
      %628 = vmatmul.mubr.f32.gmra.mxu0 %v627
      %v629 = vpop.f32.mrf.mxu0
      %v630 = vadd.f32 %v506, %v629
      %v631 = vpop.f32.mrf.mxu0
      %632 = vmatprep.mubr.f32.mxu0 0.0
      %v633 = vand.u32 %v243, 4294901760
      %v634 = vsub.f32 %v243, %v633
      %635 = vmatmul.mubr.f32.gmra.mxu0 %v634
      %v636 = vpop.f32.mrf.mxu0
      %v637 = vadd.f32 %v512, %v636
      %v638 = vpop.f32.mrf.mxu0
      %639 = vmatprep.mubr.f32.mxu0 0.0
      %v640 = vand.u32 %v246, 4294901760
      %v641 = vsub.f32 %v246, %v640
      %642 = vmatmul.mubr.f32.gmra.mxu0 %v641
      %v643 = vpop.f32.mrf.mxu0
      %v644 = vadd.f32 %v518, %v643
      %v645 = vpop.f32.mrf.mxu0
      %646 = vmatprep.mubr.f32.mxu0 0.0
      %v647 = vand.u32 %v249, 4294901760
      %v648 = vsub.f32 %v249, %v647
      %649 = vmatmul.mubr.f32.gmra.mxu0 %v648
      %v650 = vpop.f32.mrf.mxu0
      %v651 = vadd.f32 %v524, %v650
      %v652 = vpop.f32.mrf.mxu0
      %653 = vmatprep.mubr.f32.mxu0 0.0
      %v654 = vand.u32 %v252, 4294901760
      %v655 = vsub.f32 %v252, %v654
      %656 = vmatmul.mubr.f32.gmra.mxu0 %v655
      %v657 = vpop.f32.mrf.mxu0
      %v658 = vadd.f32 %v530, %v657
      %v659 = vpop.f32.mrf.mxu0
      %660 = vmatprep.mubr.f32.mxu0 0.0
      %v661 = vand.u32 %v255, 4294901760
      %v662 = vsub.f32 %v255, %v661
      %663 = vmatmul.mubr.f32.gmra.mxu0 %v662
      %v664 = vpop.f32.mrf.mxu0
      %v665 = vadd.f32 %v536, %v664
      %v666 = vpop.f32.mrf.mxu0
      %667 = vdwg.mxu0
      %668 = vmatprep.subr.mxu0 0.0
      %669 = vmatpush1.msra.mxu0 0.0
      %670 = vmatprep.subr.mxu0 0.0
      %671 = vmatpush1.msra.mxu0 0.0
      %672 = vmatprep.subr.mxu0 0.0
      %673 = vmatpush1.msra.mxu0 0.0
      %674 = vmatprep.subr.mxu0 0.0
      %675 = vmatpush1.msra.mxu0 0.0
      %676 = vmatprep.subr.mxu0 0.0
      %677 = vmatpush1.msra.mxu0 0.0
      %678 = vmatprep.subr.mxu0 0.0
      %679 = vmatpush1.msra.mxu0 0.0
      %680 = vmatprep.subr.mxu0 0.0
      %681 = vmatpush1.msra.mxu0 0.0
      %682 = vmatprep.subr.mxu0 0.0
      %683 = vmatpush1.msra.mxu0 0.0
      %684 = vmatprep.subr.mxu0 0.0
      %685 = vmatpush1.msra.mxu0 0.0
      %686 = vmatprep.subr.mxu0 0.0
      %687 = vmatpush1.msra.mxu0 0.0
      %688 = vmatprep.subr.mxu0 0.0
      %689 = vmatpush1.msra.mxu0 0.0
      %690 = vmatprep.subr.mxu0 0.0
      %691 = vmatpush1.msra.mxu0 0.0
      %692 = vmatprep.subr.mxu0 0.0
      %v693 = vand.u32 %v230, 4294901760
      %694 = vmatpush1.msra.mxu0 %v693
      %695 = vmatprep.subr.mxu0 0.0
      %v696 = vand.u32 %v229, 4294901760
      %697 = vmatpush1.msra.mxu0 %v696
      %698 = vmatprep.subr.mxu0 0.0
      %v699 = vand.u32 %v228, 4294901760
      %700 = vmatpush1.msra.mxu0 %v699
      %701 = vmatprep.subr.mxu0 0.0
      %v702 = vand.u32 %v227, 4294901760
      %703 = vmatpush1.msra.mxu0 %v702
      %704 = vmatprep.subr.mxu0 0.0
      %705 = vmatpush2.msra.mxu0 0.0
      %706 = vmatprep.subr.mxu0 0.0
      %707 = vmatpush2.msra.mxu0 0.0
      %708 = vmatprep.subr.mxu0 0.0
      %709 = vmatpush2.msra.mxu0 0.0
      %710 = vmatprep.subr.mxu0 0.0
      %711 = vmatpush2.msra.mxu0 0.0
      %712 = vmatprep.subr.mxu0 0.0
      %713 = vmatpush2.msra.mxu0 0.0
      %714 = vmatprep.subr.mxu0 0.0
      %715 = vmatpush2.msra.mxu0 0.0
      %716 = vmatprep.subr.mxu0 0.0
      %717 = vmatpush2.msra.mxu0 0.0
      %718 = vmatprep.subr.mxu0 0.0
      %719 = vmatpush2.msra.mxu0 0.0
      %720 = vmatprep.subr.mxu0 0.0
      %721 = vmatpush2.msra.mxu0 0.0
      %722 = vmatprep.subr.mxu0 0.0
      %723 = vmatpush2.msra.mxu0 0.0
      %724 = vmatprep.subr.mxu0 0.0
      %725 = vmatpush2.msra.mxu0 0.0
      %726 = vmatprep.subr.mxu0 0.0
      %727 = vmatpush2.msra.mxu0 0.0
      %728 = vmatprep.subr.mxu0 0.0
      %729 = vmatpush2.msra.mxu0 0.0
      %730 = vmatprep.subr.mxu0 0.0
      %731 = vmatpush2.msra.mxu0 0.0
      %732 = vmatprep.subr.mxu0 0.0
      %733 = vmatpush2.msra.mxu0 0.0
      %734 = vmatprep.subr.mxu0 0.0
      %735 = vmatpush2.msra.mxu0 0.0
      %736 = vmatprep.mubr.f32.mxu0 0.0
      %v737 = vand.u32 %v234, 4294901760
      %v738 = vsub.f32 %v234, %v737
      %v739 = vand.u32 %v738, 4294901760
      %740 = vmatmul.mubr.f32.gmra.mxu0 %v739
      %v741 = vpop.f32.mrf.mxu0
      %v742 = vadd.f32 %v616, %v741
      %v743 = vpop.f32.mrf.mxu0
      %744 = vmatprep.mubr.f32.mxu0 0.0
      %v745 = vand.u32 %v237, 4294901760
      %v746 = vsub.f32 %v237, %v745
      %v747 = vand.u32 %v746, 4294901760
      %748 = vmatmul.mubr.f32.gmra.mxu0 %v747
      %v749 = vpop.f32.mrf.mxu0
      %v750 = vadd.f32 %v623, %v749
      %v751 = vpop.f32.mrf.mxu0
      %752 = vmatprep.mubr.f32.mxu0 0.0
      %v753 = vand.u32 %v240, 4294901760
      %v754 = vsub.f32 %v240, %v753
      %v755 = vand.u32 %v754, 4294901760
      %756 = vmatmul.mubr.f32.gmra.mxu0 %v755
      %v757 = vpop.f32.mrf.mxu0
      %v758 = vadd.f32 %v630, %v757
      %v759 = vpop.f32.mrf.mxu0
      %760 = vmatprep.mubr.f32.mxu0 0.0
      %v761 = vand.u32 %v243, 4294901760
      %v762 = vsub.f32 %v243, %v761
      %v763 = vand.u32 %v762, 4294901760
      %764 = vmatmul.mubr.f32.gmra.mxu0 %v763
      %v765 = vpop.f32.mrf.mxu0
      %v766 = vadd.f32 %v637, %v765
      %v767 = vpop.f32.mrf.mxu0
      %768 = vmatprep.mubr.f32.mxu0 0.0
      %v769 = vand.u32 %v246, 4294901760
      %v770 = vsub.f32 %v246, %v769
      %v771 = vand.u32 %v770, 4294901760
      %772 = vmatmul.mubr.f32.gmra.mxu0 %v771
      %v773 = vpop.f32.mrf.mxu0
      %v774 = vadd.f32 %v644, %v773
      %v775 = vpop.f32.mrf.mxu0
      %776 = vmatprep.mubr.f32.mxu0 0.0
      %v777 = vand.u32 %v249, 4294901760
      %v778 = vsub.f32 %v249, %v777
      %v779 = vand.u32 %v778, 4294901760
      %780 = vmatmul.mubr.f32.gmra.mxu0 %v779
      %v781 = vpop.f32.mrf.mxu0
      %v782 = vadd.f32 %v651, %v781
      %v783 = vpop.f32.mrf.mxu0
      %784 = vmatprep.mubr.f32.mxu0 0.0
      %v785 = vand.u32 %v252, 4294901760
      %v786 = vsub.f32 %v252, %v785
      %v787 = vand.u32 %v786, 4294901760
      %788 = vmatmul.mubr.f32.gmra.mxu0 %v787
      %v789 = vpop.f32.mrf.mxu0
      %v790 = vadd.f32 %v658, %v789
      %v791 = vpop.f32.mrf.mxu0
      %792 = vmatprep.mubr.f32.mxu0 0.0
      %v793 = vand.u32 %v255, 4294901760
      %v794 = vsub.f32 %v255, %v793
      %v795 = vand.u32 %v794, 4294901760
      %796 = vmatmul.mubr.f32.gmra.mxu0 %v795
      %v797 = vpop.f32.mrf.mxu0
      %v798 = vadd.f32 %v665, %v797
      %v799 = vpop.f32.mrf.mxu0
      %800 = vdwg.mxu0
      %801 = vmatprep.subr.mxu0 0.0
      %802 = vmatpush1.msra.mxu0 0.0
      %803 = vmatprep.subr.mxu0 0.0
      %804 = vmatpush1.msra.mxu0 0.0
      %805 = vmatprep.subr.mxu0 0.0
      %806 = vmatpush1.msra.mxu0 0.0
      %807 = vmatprep.subr.mxu0 0.0
      %808 = vmatpush1.msra.mxu0 0.0
      %809 = vmatprep.subr.mxu0 0.0
      %810 = vmatpush1.msra.mxu0 0.0
      %811 = vmatprep.subr.mxu0 0.0
      %812 = vmatpush1.msra.mxu0 0.0
      %813 = vmatprep.subr.mxu0 0.0
      %814 = vmatpush1.msra.mxu0 0.0
      %815 = vmatprep.subr.mxu0 0.0
      %816 = vmatpush1.msra.mxu0 0.0
      %817 = vmatprep.subr.mxu0 0.0
      %818 = vmatpush1.msra.mxu0 0.0
      %819 = vmatprep.subr.mxu0 0.0
      %820 = vmatpush1.msra.mxu0 0.0
      %821 = vmatprep.subr.mxu0 0.0
      %822 = vmatpush1.msra.mxu0 0.0
      %823 = vmatprep.subr.mxu0 0.0
      %824 = vmatpush1.msra.mxu0 0.0
      %825 = vmatprep.subr.mxu0 0.0
      %v826 = vand.u32 %v230, 4294901760
      %v827 = vsub.f32 %v230, %v826
      %v828 = vand.u32 %v827, 4294901760
      %829 = vmatpush1.msra.mxu0 %v828
      %830 = vmatprep.subr.mxu0 0.0
      %v831 = vand.u32 %v229, 4294901760
      %v832 = vsub.f32 %v229, %v831
      %v833 = vand.u32 %v832, 4294901760
      %834 = vmatpush1.msra.mxu0 %v833
      %835 = vmatprep.subr.mxu0 0.0
      %v836 = vand.u32 %v228, 4294901760
      %v837 = vsub.f32 %v228, %v836
      %v838 = vand.u32 %v837, 4294901760
      %839 = vmatpush1.msra.mxu0 %v838
      %840 = vmatprep.subr.mxu0 0.0
      %v841 = vand.u32 %v227, 4294901760
      %v842 = vsub.f32 %v227, %v841
      %v843 = vand.u32 %v842, 4294901760
      %844 = vmatpush1.msra.mxu0 %v843
      %845 = vmatprep.subr.mxu0 0.0
      %846 = vmatpush2.msra.mxu0 0.0
      %847 = vmatprep.subr.mxu0 0.0
      %848 = vmatpush2.msra.mxu0 0.0
      %849 = vmatprep.subr.mxu0 0.0
      %850 = vmatpush2.msra.mxu0 0.0
      %851 = vmatprep.subr.mxu0 0.0
      %852 = vmatpush2.msra.mxu0 0.0
      %853 = vmatprep.subr.mxu0 0.0
      %854 = vmatpush2.msra.mxu0 0.0
      %855 = vmatprep.subr.mxu0 0.0
      %856 = vmatpush2.msra.mxu0 0.0
      %857 = vmatprep.subr.mxu0 0.0
      %858 = vmatpush2.msra.mxu0 0.0
      %859 = vmatprep.subr.mxu0 0.0
      %860 = vmatpush2.msra.mxu0 0.0
      %861 = vmatprep.subr.mxu0 0.0
      %862 = vmatpush2.msra.mxu0 0.0
      %863 = vmatprep.subr.mxu0 0.0
      %864 = vmatpush2.msra.mxu0 0.0
      %865 = vmatprep.subr.mxu0 0.0
      %866 = vmatpush2.msra.mxu0 0.0
      %867 = vmatprep.subr.mxu0 0.0
      %868 = vmatpush2.msra.mxu0 0.0
      %869 = vmatprep.subr.mxu0 0.0
      %870 = vmatpush2.msra.mxu0 0.0
      %871 = vmatprep.subr.mxu0 0.0
      %872 = vmatpush2.msra.mxu0 0.0
      %873 = vmatprep.subr.mxu0 0.0
      %874 = vmatpush2.msra.mxu0 0.0
      %875 = vmatprep.subr.mxu0 0.0
      %876 = vmatpush2.msra.mxu0 0.0
      %877 = vmatprep.mubr.f32.mxu0 0.0
      %v878 = vand.u32 %v234, 4294901760
      %879 = vmatmul.mubr.f32.gmra.mxu0 %v878
      %v880 = vpop.f32.mrf.mxu0
      %v881 = vadd.f32 %v742, %v880
      %v882 = vpop.f32.mrf.mxu0
      %883 = vmatprep.mubr.f32.mxu0 0.0
      %v884 = vand.u32 %v237, 4294901760
      %885 = vmatmul.mubr.f32.gmra.mxu0 %v884
      %v886 = vpop.f32.mrf.mxu0
      %v887 = vadd.f32 %v750, %v886
      %v888 = vpop.f32.mrf.mxu0
      %889 = vmatprep.mubr.f32.mxu0 0.0
      %v890 = vand.u32 %v240, 4294901760
      %891 = vmatmul.mubr.f32.gmra.mxu0 %v890
      %v892 = vpop.f32.mrf.mxu0
      %v893 = vadd.f32 %v758, %v892
      %v894 = vpop.f32.mrf.mxu0
      %895 = vmatprep.mubr.f32.mxu0 0.0
      %v896 = vand.u32 %v243, 4294901760
      %897 = vmatmul.mubr.f32.gmra.mxu0 %v896
      %v898 = vpop.f32.mrf.mxu0
      %v899 = vadd.f32 %v766, %v898
      %v900 = vpop.f32.mrf.mxu0
      %901 = vmatprep.mubr.f32.mxu0 0.0
      %v902 = vand.u32 %v246, 4294901760
      %903 = vmatmul.mubr.f32.gmra.mxu0 %v902
      %v904 = vpop.f32.mrf.mxu0
      %v905 = vadd.f32 %v774, %v904
      %v906 = vpop.f32.mrf.mxu0
      %907 = vmatprep.mubr.f32.mxu0 0.0
      %v908 = vand.u32 %v249, 4294901760
      %909 = vmatmul.mubr.f32.gmra.mxu0 %v908
      %v910 = vpop.f32.mrf.mxu0
      %v911 = vadd.f32 %v782, %v910
      %v912 = vpop.f32.mrf.mxu0
      %913 = vmatprep.mubr.f32.mxu0 0.0
      %v914 = vand.u32 %v252, 4294901760
      %915 = vmatmul.mubr.f32.gmra.mxu0 %v914
      %v916 = vpop.f32.mrf.mxu0
      %v917 = vadd.f32 %v790, %v916
      %v918 = vpop.f32.mrf.mxu0
      %919 = vmatprep.mubr.f32.mxu0 0.0
      %v920 = vand.u32 %v255, 4294901760
      %921 = vmatmul.mubr.f32.gmra.mxu0 %v920
      %v922 = vpop.f32.mrf.mxu0
      %v923 = vadd.f32 %v798, %v922
      %v924 = vpop.f32.mrf.mxu0
      %925 = vdwg.mxu0
      %926 = vmatprep.subr.mxu0 0.0
      %927 = vmatpush1.msra.mxu0 0.0
      %928 = vmatprep.subr.mxu0 0.0
      %929 = vmatpush1.msra.mxu0 0.0
      %930 = vmatprep.subr.mxu0 0.0
      %931 = vmatpush1.msra.mxu0 0.0
      %932 = vmatprep.subr.mxu0 0.0
      %933 = vmatpush1.msra.mxu0 0.0
      %934 = vmatprep.subr.mxu0 0.0
      %935 = vmatpush1.msra.mxu0 0.0
      %936 = vmatprep.subr.mxu0 0.0
      %937 = vmatpush1.msra.mxu0 0.0
      %938 = vmatprep.subr.mxu0 0.0
      %939 = vmatpush1.msra.mxu0 0.0
      %940 = vmatprep.subr.mxu0 0.0
      %941 = vmatpush1.msra.mxu0 0.0
      %942 = vmatprep.subr.mxu0 0.0
      %943 = vmatpush1.msra.mxu0 0.0
      %944 = vmatprep.subr.mxu0 0.0
      %945 = vmatpush1.msra.mxu0 0.0
      %946 = vmatprep.subr.mxu0 0.0
      %947 = vmatpush1.msra.mxu0 0.0
      %948 = vmatprep.subr.mxu0 0.0
      %949 = vmatpush1.msra.mxu0 0.0
      %950 = vmatprep.subr.mxu0 0.0
      %v951 = vand.u32 %v230, 4294901760
      %952 = vmatpush1.msra.mxu0 %v951
      %953 = vmatprep.subr.mxu0 0.0
      %v954 = vand.u32 %v229, 4294901760
      %955 = vmatpush1.msra.mxu0 %v954
      %956 = vmatprep.subr.mxu0 0.0
      %v957 = vand.u32 %v228, 4294901760
      %958 = vmatpush1.msra.mxu0 %v957
      %959 = vmatprep.subr.mxu0 0.0
      %v960 = vand.u32 %v227, 4294901760
      %961 = vmatpush1.msra.mxu0 %v960
      %962 = vmatprep.subr.mxu0 0.0
      %963 = vmatpush2.msra.mxu0 0.0
      %964 = vmatprep.subr.mxu0 0.0
      %965 = vmatpush2.msra.mxu0 0.0
      %966 = vmatprep.subr.mxu0 0.0
      %967 = vmatpush2.msra.mxu0 0.0
      %968 = vmatprep.subr.mxu0 0.0
      %969 = vmatpush2.msra.mxu0 0.0
      %970 = vmatprep.subr.mxu0 0.0
      %971 = vmatpush2.msra.mxu0 0.0
      %972 = vmatprep.subr.mxu0 0.0
      %973 = vmatpush2.msra.mxu0 0.0
      %974 = vmatprep.subr.mxu0 0.0
      %975 = vmatpush2.msra.mxu0 0.0
      %976 = vmatprep.subr.mxu0 0.0
      %977 = vmatpush2.msra.mxu0 0.0
      %978 = vmatprep.subr.mxu0 0.0
      %979 = vmatpush2.msra.mxu0 0.0
      %980 = vmatprep.subr.mxu0 0.0
      %981 = vmatpush2.msra.mxu0 0.0
      %982 = vmatprep.subr.mxu0 0.0
      %983 = vmatpush2.msra.mxu0 0.0
      %984 = vmatprep.subr.mxu0 0.0
      %985 = vmatpush2.msra.mxu0 0.0
      %986 = vmatprep.subr.mxu0 0.0
      %987 = vmatpush2.msra.mxu0 0.0
      %988 = vmatprep.subr.mxu0 0.0
      %989 = vmatpush2.msra.mxu0 0.0
      %990 = vmatprep.subr.mxu0 0.0
      %991 = vmatpush2.msra.mxu0 0.0
      %992 = vmatprep.subr.mxu0 0.0
      %993 = vmatpush2.msra.mxu0 0.0
      %994 = vmatprep.mubr.f32.mxu0 0.0
      %v995 = vand.u32 %v234, 4294901760
      %996 = vmatmul.mubr.f32.gmra.mxu0 %v995
      %v997 = vpop.f32.mrf.mxu0
      %v998 = vadd.f32 %v881, %v997
      %v999 = vpop.f32.mrf.mxu0
      %1000 = vmatprep.mubr.f32.mxu0 0.0
      %v1001 = vand.u32 %v237, 4294901760
      %1002 = vmatmul.mubr.f32.gmra.mxu0 %v1001
      %v1003 = vpop.f32.mrf.mxu0
      %v1004 = vadd.f32 %v887, %v1003
      %v1005 = vpop.f32.mrf.mxu0
      %1006 = vmatprep.mubr.f32.mxu0 0.0
      %v1007 = vand.u32 %v240, 4294901760
      %1008 = vmatmul.mubr.f32.gmra.mxu0 %v1007
      %v1009 = vpop.f32.mrf.mxu0
      %v1010 = vadd.f32 %v893, %v1009
      %v1011 = vpop.f32.mrf.mxu0
      %1012 = vmatprep.mubr.f32.mxu0 0.0
      %v1013 = vand.u32 %v243, 4294901760
      %1014 = vmatmul.mubr.f32.gmra.mxu0 %v1013
      %v1015 = vpop.f32.mrf.mxu0
      %v1016 = vadd.f32 %v899, %v1015
      %v1017 = vpop.f32.mrf.mxu0
      %1018 = vmatprep.mubr.f32.mxu0 0.0
      %v1019 = vand.u32 %v246, 4294901760
      %1020 = vmatmul.mubr.f32.gmra.mxu0 %v1019
      %v1021 = vpop.f32.mrf.mxu0
      %v1022 = vadd.f32 %v905, %v1021
      %v1023 = vpop.f32.mrf.mxu0
      %1024 = vmatprep.mubr.f32.mxu0 0.0
      %v1025 = vand.u32 %v249, 4294901760
      %1026 = vmatmul.mubr.f32.gmra.mxu0 %v1025
      %v1027 = vpop.f32.mrf.mxu0
      %v1028 = vadd.f32 %v911, %v1027
      %v1029 = vpop.f32.mrf.mxu0
      %1030 = vmatprep.mubr.f32.mxu0 0.0
      %v1031 = vand.u32 %v252, 4294901760
      %1032 = vmatmul.mubr.f32.gmra.mxu0 %v1031
      %v1033 = vpop.f32.mrf.mxu0
      %v1034 = vadd.f32 %v917, %v1033
      %v1035 = vpop.f32.mrf.mxu0
      %1036 = vmatprep.mubr.f32.mxu0 0.0
      %v1037 = vand.u32 %v255, 4294901760
      %1038 = vmatmul.mubr.f32.gmra.mxu0 %v1037
      %v1039 = vpop.f32.mrf.mxu0
      %v1040 = vadd.f32 %v923, %v1039
      %v1041 = vpop.f32.mrf.mxu0
      %1042 = vdwg.mxu0
      %v1044 = vcombine.high %v231, %v231
      %v1046 = vunpack.c.l.s4 1966171168
      %v1047 = vunpack.c.0.s8 %v1046
      %v1048 = vlaneseq
      %v1049 = vshrl.u32 %v1048, 7
      %v1050 = vsub.s32 %v1047, %v1049
      %v1051 = vrot.slane %v231, %v1050
      %v1053 = vunpack.c.l.s4 1966171168
      %v1054 = vunpack.c.0.s8 %v1053
      %v1055 = vlaneseq
      %v1056 = vshrl.u32 %v1055, 7
      %v1057 = vsub.s32 %v1054, %v1056
      %v1058 = vrot.slane %v1044, %v1057
      %v1059 = vcombine.high %v1051, %v1051
      %v1060 = vcombine.high %v1058, %v1058
      %v1062 = vunpack.c.l.s4 1966171168
      %v1063 = vunpack.c.0.s8 %v1062
      %v1064 = vlaneseq
      %v1065 = vshrl.u32 %v1064, 7
      %v1066 = vsub.s32 %v1063, %v1065
      %v1067 = vrot.slane %v1051, %v1066
      %v1069 = vunpack.c.l.s4 1966171168
      %v1070 = vunpack.c.0.s8 %v1069
      %v1071 = vlaneseq
      %v1072 = vshrl.u32 %v1071, 7
      %v1073 = vsub.s32 %v1070, %v1072
      %v1074 = vrot.slane %v1058, %v1073
      %v1076 = vunpack.c.l.s4 1966171168
      %v1077 = vunpack.c.0.s8 %v1076
      %v1078 = vlaneseq
      %v1079 = vshrl.u32 %v1078, 7
      %v1080 = vsub.s32 %v1077, %v1079
      %v1081 = vrot.slane %v1059, %v1080
      %v1083 = vunpack.c.l.s4 1966171168
      %v1084 = vunpack.c.0.s8 %v1083
      %v1085 = vlaneseq
      %v1086 = vshrl.u32 %v1085, 7
      %v1087 = vsub.s32 %v1084, %v1086
      %v1088 = vrot.slane %v1060, %v1087
      %v1089 = vcombine.high %v1067, %v1067
      %v1090 = vcombine.high %v1074, %v1074
      %v1091 = vcombine.high %v1081, %v1081
      %v1092 = vcombine.high %v1088, %v1088
      %v1093 = vlaneseq
      %v1094 = vshrl.u32 %v1093, 7
      %v1095 = vsub.s32 0, %v1094
      %v1096 = vrot.slane %v1067, %v1095
      %v1097 = vlaneseq
      %v1098 = vshrl.u32 %v1097, 7
      %v1099 = vsub.s32 0, %v1098
      %v1100 = vrot.slane %v1081, %v1099
      %v1101 = vlaneseq
      %v1102 = vshrl.u32 %v1101, 7
      %v1103 = vsub.s32 0, %v1102
      %v1104 = vrot.slane %v1089, %v1103
      %v1105 = vlaneseq
      %v1106 = vshrl.u32 %v1105, 7
      %v1107 = vsub.s32 0, %v1106
      %v1108 = vrot.slane %v1091, %v1107
      %v1109 = vlaneseq
      %v1110 = vshrl.u32 %v1109, 7
      %v1111 = vsub.s32 0, %v1110
      %v1112 = vrot.slane %v1074, %v1111
      %v1113 = vlaneseq
      %v1114 = vshrl.u32 %v1113, 7
      %v1115 = vsub.s32 0, %v1114
      %v1116 = vrot.slane %v1088, %v1115
      %v1117 = vlaneseq
      %v1118 = vshrl.u32 %v1117, 7
      %v1119 = vsub.s32 0, %v1118
      %v1120 = vrot.slane %v1090, %v1119
      %v1121 = vlaneseq
      %v1122 = vshrl.u32 %v1121, 7
      %v1123 = vsub.s32 0, %v1122
      %v1124 = vrot.slane %v1092, %v1123
      %v1133 = vadd.f32 %v998, %v1096
      %v1134 = vadd.f32 %v1004, %v1100
      %v1135 = vadd.f32 %v1010, %v1104
      %v1136 = vadd.f32 %v1016, %v1108
      %v1137 = vadd.f32 %v1022, %v1112
      %v1138 = vadd.f32 %v1028, %v1116
      %v1139 = vadd.f32 %v1034, %v1120
      %v1140 = vadd.f32 %v1040, %v1124
      %v1141 = vtanh.pop %v1133
      %v1142 = vtanh.pop %v1134
      %v1143 = vtanh.pop %v1135
      %v1144 = vtanh.pop %v1136
      %v1145 = vtanh.pop %v1137
      %v1146 = vtanh.pop %v1138
      %v1147 = vtanh.pop %v1139
      %v1148 = vtanh.pop %v1140
      %v1149 = vmul.f32 %v1141, 1.442695
      %v1150 = vpow.pop %v1149
      %v1151 = vmul.f32 %v1142, 1.442695
      %v1152 = vpow.pop %v1151
      %v1153 = vmul.f32 %v1143, 1.442695
      %v1154 = vpow.pop %v1153
      %v1155 = vmul.f32 %v1144, 1.442695
      %v1156 = vpow.pop %v1155
      %v1157 = vmul.f32 %v1145, 1.442695
      %v1158 = vpow.pop %v1157
      %v1159 = vmul.f32 %v1146, 1.442695
      %v1160 = vpow.pop %v1159
      %v1161 = vmul.f32 %v1147, 1.442695
      %v1162 = vpow.pop %v1161
      %v1163 = vmul.f32 %v1148, 1.442695
      %v1164 = vpow.pop %v1163
      %v1165 = vld [vmem:[#allocation3] sm:$0xff]
      %vm1166 = vcmask 7168
      %v1167 = vsel %vm1166, %v1150, 0.0
      %v1168 = vrot.slane %v1167, 4
      %v1169 = vadd.f32 %v1167, %v1168
      %v1170 = vrot.slane %v1169, 2
      %v1171 = vadd.f32 %v1169, %v1170
      %v1172 = vrot.slane %v1171, 1
      %v1173 = vadd.f32 %v1171, %v1172
      %v1174 = vsel %vm1166, %v1152, 0.0
      %v1175 = vrot.slane %v1174, 4
      %v1176 = vadd.f32 %v1174, %v1175
      %v1177 = vrot.slane %v1176, 2
      %v1178 = vadd.f32 %v1176, %v1177
      %v1179 = vrot.slane %v1178, 1
      %v1180 = vadd.f32 %v1178, %v1179
      %v1181 = vsel %vm1166, %v1154, 0.0
      %v1182 = vrot.slane %v1181, 4
      %v1183 = vadd.f32 %v1181, %v1182
      %v1184 = vrot.slane %v1183, 2
      %v1185 = vadd.f32 %v1183, %v1184
      %v1186 = vrot.slane %v1185, 1
      %v1187 = vadd.f32 %v1185, %v1186
      %v1188 = vsel %vm1166, %v1156, 0.0
      %v1189 = vrot.slane %v1188, 4
      %v1190 = vadd.f32 %v1188, %v1189
      %v1191 = vrot.slane %v1190, 2
      %v1192 = vadd.f32 %v1190, %v1191
      %v1193 = vrot.slane %v1192, 1
      %v1194 = vadd.f32 %v1192, %v1193
      %v1195 = vsel %vm1166, %v1158, 0.0
      %v1196 = vrot.slane %v1195, 4
      %v1197 = vadd.f32 %v1195, %v1196
      %v1198 = vrot.slane %v1197, 2
      %v1199 = vadd.f32 %v1197, %v1198
      %v1200 = vrot.slane %v1199, 1
      %v1201 = vadd.f32 %v1199, %v1200
      %v1202 = vsel %vm1166, %v1160, 0.0
      %v1203 = vrot.slane %v1202, 4
      %v1204 = vadd.f32 %v1202, %v1203
      %v1205 = vrot.slane %v1204, 2
      %v1206 = vadd.f32 %v1204, %v1205
      %v1207 = vrot.slane %v1206, 1
      %v1208 = vadd.f32 %v1206, %v1207
      %v1209 = vsel %vm1166, %v1162, 0.0
      %v1210 = vrot.slane %v1209, 4
      %v1211 = vadd.f32 %v1209, %v1210
      %v1212 = vrot.slane %v1211, 2
      %v1213 = vadd.f32 %v1211, %v1212
      %v1214 = vrot.slane %v1213, 1
      %v1215 = vadd.f32 %v1213, %v1214
      %v1216 = vsel %vm1166, %v1164, 0.0
      %v1217 = vrot.slane %v1216, 4
      %v1218 = vadd.f32 %v1216, %v1217
      %v1219 = vrot.slane %v1218, 2
      %v1220 = vadd.f32 %v1218, %v1219
      %v1221 = vrot.slane %v1220, 1
      %v1222 = vadd.f32 %v1220, %v1221
      %vm1231 = vcmask 1041409
      %v1232 = vsel %vm1231, %v1180, %v1173
      %vm1233 = vcmask 1042434
      %v1234 = vsel %vm1233, %v1187, %v1232
      %vm1235 = vcmask 1043459
      %v1236 = vsel %vm1235, %v1194, %v1234
      %vm1237 = vcmask 1044484
      %v1238 = vsel %vm1237, %v1201, %v1236
      %vm1239 = vcmask 1045509
      %v1240 = vsel %vm1239, %v1208, %v1238
      %vm1241 = vcmask 1046534
      %v1242 = vsel %vm1241, %v1215, %v1240
      %vm1243 = vcmask 1047559
      %v1244 = vsel %vm1243, %v1222, %v1242
      %v1246 = vadd.f32 %v1165, %v1244
      %1247 = vst.msk [vmem:[#allocation3] sm:$0xff] %vm1166, %v1246
      %v1248 = vld [vmem:[#allocation2] sm:$0xff]
      %1250 = vset.pattern.permute.xlu0 0
      %1251 = vperm.xlu0 %1250, %v1150
      %v1252 = vpop.permute.xlu0 %1251
      %1255 = vset.pattern.permute.xlu0 0
      %1256 = vperm.xlu0 %1255, %v1152
      %v1257 = vpop.permute.xlu0 %1256
      %1260 = vset.pattern.permute.xlu0 0
      %1261 = vperm.xlu0 %1260, %v1154
      %v1262 = vpop.permute.xlu0 %1261
      %1265 = vset.pattern.permute.xlu0 0
      %1266 = vperm.xlu0 %1265, %v1156
      %v1267 = vpop.permute.xlu0 %1266
      %1270 = vset.pattern.permute.xlu0 0
      %1271 = vperm.xlu0 %1270, %v1158
      %v1272 = vpop.permute.xlu0 %1271
      %1275 = vset.pattern.permute.xlu0 0
      %1276 = vperm.xlu0 %1275, %v1160
      %v1277 = vpop.permute.xlu0 %1276
      %1280 = vset.pattern.permute.xlu0 0
      %1281 = vperm.xlu0 %1280, %v1162
      %v1282 = vpop.permute.xlu0 %1281
      %1285 = vset.pattern.permute.xlu0 0
      %1286 = vperm.xlu0 %1285, %v1164
      %v1287 = vpop.permute.xlu0 %1286
      %v1289 = vmul.f32 %v1252, %v219
      %v1290 = vmul.f32 %v1257, %v220
      %v1291 = vmul.f32 %v1262, %v221
      %v1292 = vmul.f32 %v1267, %v222
      %v1293 = vmul.f32 %v1272, %v223
      %v1294 = vmul.f32 %v1277, %v224
      %v1295 = vmul.f32 %v1282, %v225
      %v1296 = vmul.f32 %v1287, %v226
      %v1297 = vsel %vm232, %v1289, 0.0
      %v1298 = vrot.slane %v1297, 4
      %v1299 = vadd.f32 %v1297, %v1298
      %v1300 = vrot.slane %v1299, 2
      %v1301 = vadd.f32 %v1299, %v1300
      %v1302 = vrot.slane %v1301, 1
      %v1303 = vadd.f32 %v1301, %v1302
      %v1304 = vsel %vm232, %v1290, 0.0
      %v1305 = vrot.slane %v1304, 4
      %v1306 = vadd.f32 %v1304, %v1305
      %v1307 = vrot.slane %v1306, 2
      %v1308 = vadd.f32 %v1306, %v1307
      %v1309 = vrot.slane %v1308, 1
      %v1310 = vadd.f32 %v1308, %v1309
      %v1311 = vsel %vm232, %v1291, 0.0
      %v1312 = vrot.slane %v1311, 4
      %v1313 = vadd.f32 %v1311, %v1312
      %v1314 = vrot.slane %v1313, 2
      %v1315 = vadd.f32 %v1313, %v1314
      %v1316 = vrot.slane %v1315, 1
      %v1317 = vadd.f32 %v1315, %v1316
      %v1318 = vsel %vm232, %v1292, 0.0
      %v1319 = vrot.slane %v1318, 4
      %v1320 = vadd.f32 %v1318, %v1319
      %v1321 = vrot.slane %v1320, 2
      %v1322 = vadd.f32 %v1320, %v1321
      %v1323 = vrot.slane %v1322, 1
      %v1324 = vadd.f32 %v1322, %v1323
      %v1325 = vsel %vm232, %v1293, 0.0
      %v1326 = vrot.slane %v1325, 4
      %v1327 = vadd.f32 %v1325, %v1326
      %v1328 = vrot.slane %v1327, 2
      %v1329 = vadd.f32 %v1327, %v1328
      %v1330 = vrot.slane %v1329, 1
      %v1331 = vadd.f32 %v1329, %v1330
      %v1332 = vsel %vm232, %v1294, 0.0
      %v1333 = vrot.slane %v1332, 4
      %v1334 = vadd.f32 %v1332, %v1333
      %v1335 = vrot.slane %v1334, 2
      %v1336 = vadd.f32 %v1334, %v1335
      %v1337 = vrot.slane %v1336, 1
      %v1338 = vadd.f32 %v1336, %v1337
      %v1339 = vsel %vm232, %v1295, 0.0
      %v1340 = vrot.slane %v1339, 4
      %v1341 = vadd.f32 %v1339, %v1340
      %v1342 = vrot.slane %v1341, 2
      %v1343 = vadd.f32 %v1341, %v1342
      %v1344 = vrot.slane %v1343, 1
      %v1345 = vadd.f32 %v1343, %v1344
      %v1346 = vsel %vm232, %v1296, 0.0
      %v1347 = vrot.slane %v1346, 4
      %v1348 = vadd.f32 %v1346, %v1347
      %v1349 = vrot.slane %v1348, 2
      %v1350 = vadd.f32 %v1348, %v1349
      %v1351 = vrot.slane %v1350, 1
      %v1352 = vadd.f32 %v1350, %v1351
      %v1361 = vsel %vm1231, %v1310, %v1303
      %v1362 = vsel %vm1233, %v1317, %v1361
      %v1363 = vsel %vm1235, %v1324, %v1362
      %v1364 = vsel %vm1237, %v1331, %v1363
      %v1365 = vsel %vm1239, %v1338, %v1364
      %v1366 = vsel %vm1241, %v1345, %v1365
      %v1367 = vsel %vm1243, %v1352, %v1366
      %v1369 = vadd.f32 %v1248, %v1367
      %1370 = vst.msk [vmem:[#allocation2] sm:$0xff] %vm232, %v1369
      // Predicated region
      $region37: #{global_attention.1} parent=31 // pred_check
        %p1371 = pneg %p211
      $region38: #{global_attention.1} parent=31 // pred_check_branch
        %1373 = sbr.rel (%p1371) target = $region40
      $region39: #{global_attention.1} parent=31 // pred_region
        %v1374 = vld [vmem:[#allocation2] sm:$0xff]
        %v1375 = vld [vmem:[#allocation3] sm:$0xff]
        %1377 = vset.pattern.permute.xlu0 0
        %1378 = vperm.xlu0 %1377, %v1375
        %v1379 = vpop.permute.xlu0 %1378
        %v1381 = vrcp.pop %v1379
        %v1382 = vmul.f32 %v1374, %v1381
        %1383 = vst.msk [vmem:[%s210] sm:$0xff] %vm232, %v1382
      $region40: #{global_attention.1} parent=31 // pred_fallthru
        _
      %p1384 = scmp.lt.s32.totalorder %s18, 1
      %s1385 = scalar_select %p1384, %s18, 1
      %s1386 = smul.addr %s1385, 8
      %s1387 = scalar_lea.vmem %s3, %s1386
      // Predicated region
      $region41: #{global_attention.1} parent=31 // pred_check
        %p1388 = pneg %p119
      $region42: #{global_attention.1} parent=31 // pred_check_branch
        %1390 = sbr.rel (%p1388) target = $region44
      $region43: #{global_attention.1} parent=31 // pred_region
        _
      $region44: #{global_attention.1} parent=31 // pred_fallthru
        _
    $region32: #{global_attention.1} parent=5 // pred_fallthru
      _
    %p1391 = scmp.le.s32.totalorder 2, %s9
    // Predicated region
    $region45: #{global_attention.1} parent=5 // pred_check
      %p1392 = pneg %p1391
    $region46: #{global_attention.1} parent=5 // pred_check_branch
      %1394 = sbr.rel (%p1392) target = $region48
    $region47: #{global_attention.1} parent=5 // pred_region
      %s1395 = ssub.s32 %s9, 2
      // Predicated region
      $region49: #{global_attention.1} parent=47 // pred_check
        %p1396 = pneg %p125
      $region50: #{global_attention.1} parent=47 // pred_check_branch
        %1398 = sbr.rel (%p1396) target = $region52
      $region51: #{global_attention.1} parent=47 // pred_region
        %p1399 = scmp.lt.s32.totalorder %s20, 1
        %s1400 = scalar_select %p1399, %s20, 1
        %s1401 = smul.addr %s1400, 8
        %s1402 = scalar_lea.vmem %s3, %s1401
      $region52: #{global_attention.1} parent=47 // pred_fallthru
        _
    $region48: #{global_attention.1} parent=5 // pred_fallthru
      _
  $region6: #{global_attention.1} parent=0 // loop_footer
    %s13 = sadd.s32 1, %s9
  $region7: #{global_attention.1} parent=0 // loop_footer_branch
    %8 = sbr.rel target = $region3
  $region8: #{global_attention.1} parent=0 // loop_exit
    _

</llo_original>
